<compile_context>
chip_gen: v7x
topology: tpu7x:2x2x1
jax: 0.10.0
libtpu: 0.0.40
codegen_flags: <defaults>
</compile_context>

<pallas_src>
import functools

import jax
import jax.numpy as jnp
from jax.experimental import pallas as pl
from jax.experimental.pallas import tpu as pltpu


def _ce_label_smooth_kernel(x_ref, t_ref, o_ref, *, epsilon, num_classes,
                            total_n, tile_n, needs_mask):
    pid = pl.program_id(0)

    @pl.when(pid == 0)
    def _init():
        o_ref[...] = jnp.zeros_like(o_ref)

    x = x_ref[...].astype(jnp.float32)                        # (tile_n, C)
    tn, c = x.shape

    # --- log-softmax pieces (no (tile_n, C) log_probs materialized) ---
    x_max = jnp.max(x, axis=1, keepdims=True)                 # (tile_n, 1)
    shifted = x - x_max                                       # (tile_n, C)
    log_z = jnp.log(jnp.sum(jnp.exp(shifted), axis=1, keepdims=True))   # (tile_n, 1)
    row_sum = jnp.sum(shifted, axis=1, keepdims=True)                   # (tile_n, 1)

    # --- gather shifted logit at the target class via compare+select+row-sum ---
    labels = t_ref[...]                                       # (tile_n, 1) i32
    class_ids = jax.lax.broadcasted_iota(jnp.int32, (tn, c), 1)
    tgt_shift = jnp.sum(jnp.where(class_ids == labels, shifted, 0.0),
                        axis=1, keepdims=True)                # (tile_n, 1)

    # --- folded label-smoothed cross-entropy per row ---
    # loss_row = -(1-eps)*(shifted[t]-logZ) - (eps/C)*(sum_c shifted - C*logZ)
    #          = logZ - (1-eps)*shifted[t] - (eps/C)*sum_c shifted
    eps = jnp.float32(epsilon)
    per_row = (log_z
               - (1.0 - eps) * tgt_shift
               - (eps / jnp.float32(num_classes)) * row_sum)  # (tile_n, 1)

    # --- mask rows padded up to a multiple of tile_n (only if ragged) ---
    if needs_mask:
        row_idx = pid * tile_n + jax.lax.broadcasted_iota(jnp.int32, (tn, 1), 0)
        per_row = jnp.where(row_idx < total_n, per_row, 0.0)

    o_ref[...] += jnp.sum(per_row, keepdims=True)             # (1, 1)

    @pl.when(pid == pl.num_programs(0) - 1)
    def _finalize():
        o_ref[...] = o_ref[...] * jnp.float32(1.0 / total_n)


def cross_entropy_label_smooth(inputs, targets, *, num_classes, epsilon,
                               block_n=1024):
    """inputs: (N, C) float logits (any float dtype); targets: (N,) int labels."""
    n, c = inputs.shape
    assert c == num_classes

    itemsize = jnp.dtype(inputs.dtype).itemsize
    # Keep each (tile_n, C) logits buffer <= ~4 MiB so the double-buffered
    # pipeline fits comfortably in scoped VMEM on all generations (incl. v7x).
    max_rows = max(8, (4 * 1024 * 1024) // max(c * itemsize, 1))
    tile_n = max(8, min(block_n, max_rows, pl.cdiv(n, 8) * 8))
    tile_n = (tile_n // 8) * 8
    n_pad = pl.cdiv(n, tile_n) * tile_n
    grid_n = n_pad // tile_n

    x = inputs  # native dtype; f32 cast happens inside the kernel
    t = targets.astype(jnp.int32).reshape(n, 1)
    if n_pad != n:
        x = jnp.pad(x, ((0, n_pad - n), (0, 0)))
        t = jnp.pad(t, ((0, n_pad - n), (0, 0)))

    kernel = functools.partial(
        _ce_label_smooth_kernel,
        epsilon=float(epsilon),
        num_classes=int(num_classes),
        total_n=int(n),
        tile_n=int(tile_n),
        needs_mask=(n_pad != n),
    )

    cost = pl.CostEstimate(
        flops=6 * n * c,
        transcendentals=n * c + n,
        bytes_accessed=n * c * itemsize + n * 4 + 4,
    )

    out = pl.pallas_call(
        kernel,
        out_shape=jax.ShapeDtypeStruct((1, 1), jnp.float32),
        grid_spec=pltpu.PrefetchScalarGridSpec(
            num_scalar_prefetch=0,
            grid=(grid_n,),
            in_specs=[
                pl.BlockSpec((tile_n, c), lambda i: (i, 0)),
                pl.BlockSpec((tile_n, 1), lambda i: (i, 0)),
            ],
            out_specs=pl.BlockSpec((1, 1), lambda i: (0, 0)),
        ),
        compiler_params=pltpu.CompilerParams(
            dimension_semantics=("arbitrary",),
        ),
        cost_estimate=cost,
    )(x, t)
    return out[0, 0]


def _reference(inputs, targets, *, num_classes, epsilon):
    log_probs = jax.nn.log_softmax(inputs.astype(jnp.float32), axis=1)
    one_hot = jax.nn.one_hot(targets, num_classes, dtype=jnp.float32)
    smoothed = (1.0 - epsilon) * one_hot + epsilon / num_classes
    return jnp.sum(jnp.mean(-smoothed * log_probs, axis=0))


if __name__ == "__main__":
    num_classes = 10
    epsilon = 0.1
    batch = 8

    key = jax.random.PRNGKey(0)
    k_x, k_t = jax.random.split(key)
    inputs = jax.random.normal(k_x, (batch, num_classes), dtype=jnp.float32)
    targets = jax.random.randint(k_t, (batch,), 0, num_classes, dtype=jnp.int32)

    loss = cross_entropy_label_smooth(
        inputs, targets, num_classes=num_classes, epsilon=epsilon
    )
    jax.block_until_ready(loss)

    ref = _reference(inputs, targets, num_classes=num_classes, epsilon=epsilon)
    assert jnp.allclose(loss, ref, atol=1e-5, rtol=1e-5), (loss, ref)

    # Ragged, multi-tile batch (exercises masking + accumulation path).
    batch2 = 37
    k_x2, k_t2 = jax.random.split(jax.random.PRNGKey(1))
    inputs2 = jax.random.normal(k_x2, (batch2, num_classes), dtype=jnp.float32)
    targets2 = jax.random.randint(k_t2, (batch2,), 0, num_classes, dtype=jnp.int32)
    loss2 = cross_entropy_label_smooth(
        inputs2, targets2, num_classes=num_classes, epsilon=epsilon, block_n=16
    )
    jax.block_until_ready(loss2)
    ref2 = _reference(inputs2, targets2, num_classes=num_classes, epsilon=epsilon)
    assert jnp.allclose(loss2, ref2, atol=1e-5, rtol=1e-5), (loss2, ref2)

    # bf16 logits path (native-dtype HBM read, in-kernel f32 cast).
    inputs3 = inputs.astype(jnp.bfloat16)
    loss3 = cross_entropy_label_smooth(
        inputs3, targets, num_classes=num_classes, epsilon=epsilon
    )
    jax.block_until_ready(loss3)
    ref3 = _reference(inputs3, targets, num_classes=num_classes, epsilon=epsilon)
    assert jnp.allclose(loss3, ref3, atol=1e-2, rtol=1e-2), (loss3, ref3)

    print("KERNEL_OK")
</pallas_src>

<mosaic_0001>
module attributes {stable_mosaic.version = 11 : i64} {
  func.func @_ce_label_smooth_kernel(%arg0: i32, %arg1: memref<8x10xf32, #tpu.memory_space<vmem>>, %arg2: memref<8x1xi32, #tpu.memory_space<vmem>>, %arg3: memref<1x1xf32, #tpu.memory_space<vmem>>) attributes {dimension_semantics = [#tpu.dimension_semantics<arbitrary>], iteration_bounds = array<i64: 1>, scalar_prefetch = 0 : i64, scratch_operands = 0 : i64, tpu.core_type = #tpu.core_type<tc>, window_params = [{transform_indices = @transform_0, window_bounds = array<i64: 8, 10>}, {transform_indices = @transform_1, window_bounds = array<i64: 8, 1>}, {pipeline_mode = #tpu.pipeline_mode<synchronous>, transform_indices = @transform_2, window_bounds = array<i64: 1, 1>}]} {
    %c0_i32 = arith.constant 0 : i32
    %0 = arith.cmpi eq, %arg0, %c0_i32 : i32
    %1 = arith.extui %0 : i1 to i32
    %c0_i32_0 = arith.constant 0 : i32
    %2 = arith.cmpi ne, %1, %c0_i32_0 : i32
    scf.if %2 {
      %cst_19 = arith.constant 0.000000e+00 : f32
      %41 = vector.broadcast %cst_19 : f32 to vector<1x1xf32>
      %c0_20 = arith.constant 0 : index
      %c0_21 = arith.constant 0 : index
      %42 = vector.load %arg3[%c0_20, %c0_21] : memref<1x1xf32, #tpu.memory_space<vmem>>, vector<1x1xf32>
      tpu.vector_store %arg3[%c0_20, %c0_21], %41 {strides = array<i32>} : memref<1x1xf32, #tpu.memory_space<vmem>>, vector<1x1xf32>,
    } else {
    }
    %c0 = arith.constant 0 : index
    %c0_1 = arith.constant 0 : index
    %3 = vector.load %arg1[%c0, %c0_1] : memref<8x10xf32, #tpu.memory_space<vmem>>, vector<8x10xf32>
    %cst = arith.constant dense<0xFF800000> : vector<8xf32>
    %4 = vector.multi_reduction <maximumf>, %3, %cst [1] : vector<8x10xf32> to vector<8xf32>
    %5 = vector.shape_cast %4 : vector<8xf32> to vector<8x1xf32>
    %6 = vector.broadcast %5 : vector<8x1xf32> to vector<8x10xf32>
    %7 = arith.subf %3, %6 : vector<8x10xf32>
    %8 = math.exp %7 : vector<8x10xf32>
    %cst_2 = arith.constant dense<0.000000e+00> : vector<8xf32>
    %9 = vector.multi_reduction <add>, %8, %cst_2 [1] : vector<8x10xf32> to vector<8xf32>
    %10 = vector.shape_cast %9 : vector<8xf32> to vector<8x1xf32>
    %11 = math.log %10 : vector<8x1xf32>
    %cst_3 = arith.constant dense<0.000000e+00> : vector<8xf32>
    %12 = vector.multi_reduction <add>, %7, %cst_3 [1] : vector<8x10xf32> to vector<8xf32>
    %13 = vector.shape_cast %12 : vector<8xf32> to vector<8x1xf32>
    %c0_4 = arith.constant 0 : index
    %c0_5 = arith.constant 0 : index
    %14 = vector.load %arg2[%c0_4, %c0_5] : memref<8x1xi32, #tpu.memory_space<vmem>>, vector<8x1xi32>
    %15 = tpu.iota {dimensions = array<i32: 1>} : vector<8x10xi32>
    %16 = vector.broadcast %14 : vector<8x1xi32> to vector<8x10xi32>
    %17 = arith.cmpi eq, %15, %16 : vector<8x10xi32>
    %cst_6 = arith.constant 0.000000e+00 : f32
    %18 = vector.broadcast %cst_6 : f32 to vector<8x10xf32>
    %19 = arith.select %17, %7, %18 : vector<8x10xi1>, vector<8x10xf32>
    %cst_7 = arith.constant dense<0.000000e+00> : vector<8xf32>
    %20 = vector.multi_reduction <add>, %19, %cst_7 [1] : vector<8x10xf32> to vector<8xf32>
    %21 = vector.shape_cast %20 : vector<8xf32> to vector<8x1xf32>
    %cst_8 = arith.constant 1.000000e+00 : f32
    %cst_9 = arith.constant 1.000000e-01 : f32
    %22 = arith.subf %cst_8, %cst_9 : f32
    %23 = vector.broadcast %22 : f32 to vector<8x1xf32>
    %24 = arith.mulf %23, %21 : vector<8x1xf32>
    %25 = arith.subf %11, %24 : vector<8x1xf32>
    %cst_10 = arith.constant 1.000000e-01 : f32
    %cst_11 = arith.constant 1.000000e+01 : f32
    %26 = arith.divf %cst_10, %cst_11 : f32
    %27 = vector.broadcast %26 : f32 to vector<8x1xf32>
    %28 = arith.mulf %27, %13 : vector<8x1xf32>
    %29 = arith.subf %25, %28 : vector<8x1xf32>
    %c0_12 = arith.constant 0 : index
    %c0_13 = arith.constant 0 : index
    %30 = vector.load %arg3[%c0_12, %c0_13] : memref<1x1xf32, #tpu.memory_space<vmem>>, vector<1x1xf32>
    %31 = vector.shape_cast %29 : vector<8x1xf32> to vector<1x8x1xf32>
    %cst_14 = arith.constant dense<0.000000e+00> : vector<1xf32>
    %32 = vector.multi_reduction <add>, %31, %cst_14 [1, 2] : vector<1x8x1xf32> to vector<1xf32>
    %33 = vector.shape_cast %32 : vector<1xf32> to vector<1x1x1xf32>
    %34 = vector.extract %33[0, 0, 0] : f32 from vector<1x1x1xf32>
    %35 = vector.broadcast %34 : f32 to vector<1x1xf32>
    %36 = arith.addf %30, %35 : vector<1x1xf32>
    %c0_15 = arith.constant 0 : index
    %c0_16 = arith.constant 0 : index
    %37 = vector.load %arg3[%c0_15, %c0_16] : memref<1x1xf32, #tpu.memory_space<vmem>>, vector<1x1xf32>
    tpu.vector_store %arg3[%c0_15, %c0_16], %36 {strides = array<i32>} : memref<1x1xf32, #tpu.memory_space<vmem>>, vector<1x1xf32>,
    %c0_i32_17 = arith.constant 0 : i32
    %38 = arith.cmpi eq, %arg0, %c0_i32_17 : i32
    %39 = arith.extui %38 : i1 to i32
    %c0_i32_18 = arith.constant 0 : i32
    %40 = arith.cmpi ne, %39, %c0_i32_18 : i32
    scf.if %40 {
      %c0_19 = arith.constant 0 : index
      %c0_20 = arith.constant 0 : index
      %41 = vector.load %arg3[%c0_19, %c0_20] : memref<1x1xf32, #tpu.memory_space<vmem>>, vector<1x1xf32>
      %cst_21 = arith.constant 1.250000e-01 : f32
      %42 = vector.broadcast %cst_21 : f32 to vector<1x1xf32>
      %43 = arith.mulf %41, %42 : vector<1x1xf32>
      %c0_22 = arith.constant 0 : index
      %c0_23 = arith.constant 0 : index
      %44 = vector.load %arg3[%c0_22, %c0_23] : memref<1x1xf32, #tpu.memory_space<vmem>>, vector<1x1xf32>
      tpu.vector_store %arg3[%c0_22, %c0_23], %43 {strides = array<i32>} : memref<1x1xf32, #tpu.memory_space<vmem>>, vector<1x1xf32>,
    } else {
    }
    return
  }
  func.func @transform_0(%arg0: i32) -> (i32, i32) {
    %c0_i32 = arith.constant 0 : i32
    %c0_i32_0 = arith.constant 0 : i32
    return %arg0, %c0_i32 : i32, i32
  }
  func.func @transform_1(%arg0: i32) -> (i32, i32) {
    %c0_i32 = arith.constant 0 : i32
    %c0_i32_0 = arith.constant 0 : i32
    return %arg0, %c0_i32 : i32, i32
  }
  func.func @transform_2(%arg0: i32) -> (i32, i32) {
    %c0_i32 = arith.constant 0 : i32
    %c0_i32_0 = arith.constant 0 : i32
    %c0_i32_1 = arith.constant 0 : i32
    return %c0_i32, %c0_i32_0 : i32, i32
  }
}

</mosaic_0001>

<llo_original>
// kernel: tpu_custom_call.1
$region0: #{tpu_custom_call.1}
  #allocation0 [shape = 'u32[]', space=smem, size = 0x4, offset = 0x4, fixed_abs, tag = 'smem constant byte address 0x4 - core index']
  #allocation1 [shape = 'u32[144,128]{1,0:T(1,128)}', space=vmem, size = 0x12000, scoped, tag = 'internal scratch']
  %s0 = inlined_call_operand.vmem [shape: f32[8,10], index: 0, kind: input, shape index: {}]
  %s1 = inlined_call_operand.vmem [shape: s32[8,1], index: 1, kind: input, shape index: {}]
  %s2 = inlined_call_operand.hbm [shape: f32[1,1], index: 2, kind: output, shape index: {}]
  %s3 = sld [smem:[#allocation0]]
  $region26: #{tpu_custom_call.1} parent=0
    _
  %s5 = ssub.s32 1, %s3
  %s6 = scalar_select 0, %s5, %s3
  $region1: #{tpu_custom_call.1} parent=0
    #allocation2 [shape = 'u8[512]{0}', space=vmem, size = 0x400, scoped, tag = 'output window, operand 0, single buffered']
    #allocation3 [shape = 's32[1]{0}', space=sflag, size = 0x4, scoped, tag = 'scoped memory for tpu_custom_call.1']
    %7 = vsyncpa [#allocation3], 0
    // Predicated region
    $region2: #{tpu_custom_call.1} parent=1 // pred_check
      _
    $region3: #{tpu_custom_call.1} parent=1 // pred_check_branch
      %9 = sbr.rel (0) target = $region5
    $region4: #{tpu_custom_call.1} parent=1 // pred_region
      _
    $region5: #{tpu_custom_call.1} parent=1 // pred_fallthru
      _
    // Predicated region
    $region6: #{tpu_custom_call.1} parent=1 // pred_check
      _
    $region7: #{tpu_custom_call.1} parent=1 // pred_check_branch
      %11 = sbr.rel (0) target = $region9
    $region8: #{tpu_custom_call.1} parent=1 // pred_region
      _
    $region9: #{tpu_custom_call.1} parent=1 // pred_fallthru
      _
    %p12 = scmp.eq.s32.totalorder 0, 0
    // Predicated region
    $region10: #{tpu_custom_call.1} parent=1 // pred_check
      %p13 = pneg %p12
    $region11: #{tpu_custom_call.1} parent=1 // pred_check_branch
      %15 = sbr.rel (%p13) target = $region13
    $region12: #{tpu_custom_call.1} parent=1 // pred_region
      %vm16 = vcmask 0
      %17 = vst.msk [vmem:[#allocation2] sm:$0x1] %vm16, 0.0
    $region13: #{tpu_custom_call.1} parent=1 // pred_fallthru
      _
    %v18 = vld [vmem:[%s0] sm:$0xff]
    %vm19 = vcmask 80896
    %v20 = vsel %vm19, %v18, -inf
    %21 = vmax.xlane.f32.xlu0 %v20
    %v22 = vpop.xlane.xlu0 %21
    %v23 = vsub.f32 %v18, %v22
    %v24 = vmul.f32 %v23, 1.442695
    %v25 = vpow.pop %v24
    %v26 = vsel %vm19, %v25, 0.0
    %27 = vadd.xlane.f32.xlu0 %v26
    %v28 = vpop.xlane.xlu0 %27
    %v29 = vlog2.pop %v28
    %v30 = vmul.f32 %v29, 0.6931472
    %v31 = vsel %vm19, %v23, 0.0
    %32 = vadd.xlane.f32.xlu0 %v31
    %v33 = vpop.xlane.xlu0 %32
    %v34 = vld [vmem:[%s1] sm:$0xff]
    %v35 = vlaneseq
    %v36 = vand.u32 %v35, 127
    %37 = vset.pattern.permute.xlu0 0
    %38 = vperm.xlu0 %37, %v34
    %v39 = vpop.permute.xlu0 %38
    %vm40 = vcmp.eq.s32.totalorder %v36, %v39
    %v41 = vsel %vm40, %v23, 0.0
    %v42 = vsel %vm19, %v41, 0.0
    %43 = vadd.xlane.f32.xlu0 %v42
    %v44 = vpop.xlane.xlu0 %43
    %v45 = vmul.f32 %v44, 0.9
    %v46 = vsub.f32 %v30, %v45
    %v47 = vmul.f32 %v33, 0.01
    %v48 = vsub.f32 %v46, %v47
    %v49 = vld [vmem:[#allocation2] sm:$0x1]
    %vm50 = vcmask 7168
    %v51 = vsel %vm50, %v48, 0.0
    %52 = vadd.xlane.f32.xlu0 %v51
    %v53 = vpop.xlane.xlu0 %52
    %v54 = vrot.slane %v53, 4
    %v55 = vadd.f32 %v53, %v54
    %v56 = vrot.slane %v55, 2
    %v57 = vadd.f32 %v55, %v56
    %v58 = vrot.slane %v57, 1
    %v59 = vadd.f32 %v57, %v58
    %s60 = vtos %v59
    %v61 = vstv %s60
    %v62 = vadd.f32 %v49, %v61
    %vm63 = vcmask 0
    %64 = vst.msk [vmem:[#allocation2] sm:$0x1] %vm63, %v62
    // Predicated region
    $region14: #{tpu_custom_call.1} parent=1 // pred_check
      %p65 = pneg %p12
    $region15: #{tpu_custom_call.1} parent=1 // pred_check_branch
      %67 = sbr.rel (%p65) target = $region17
    $region16: #{tpu_custom_call.1} parent=1 // pred_region
      %v68 = vld [vmem:[#allocation2] sm:$0x1]
      %v69 = vmul.f32 %v68, 0.125
      %70 = vst.msk [vmem:[#allocation2] sm:$0x1] %vm63, %v69
    $region17: #{tpu_custom_call.1} parent=1 // pred_fallthru
      _
    // Predicated region
    $region18: #{tpu_custom_call.1} parent=1 // pred_check
      _
    $region19: #{tpu_custom_call.1} parent=1 // pred_check_branch
      %72 = sbr.rel (0) target = $region21
    $region20: #{tpu_custom_call.1} parent=1 // pred_region
      %s74 = ssub.s32 16, 16
      %75 = vsyncadd [#allocation3], %s74
      %s77 = sshll.u32 [#allocation2], 4
      %s78 = int_to_ptr.vmem [resolvable:$true] %s77
      %80 = dma.vmem_to_hbm [thread:$0]  %s78, 16, %s2, [#allocation3]
    $region21: #{tpu_custom_call.1} parent=1 // pred_fallthru
      _
    // Predicated region
    $region22: #{tpu_custom_call.1} parent=1 // pred_check
      _
    $region23: #{tpu_custom_call.1} parent=1 // pred_check_branch
      %82 = sbr.rel (0) target = $region25
    $region24: #{tpu_custom_call.1} parent=1 // pred_region
      %83 = dma.done [#allocation3], 16
    $region25: #{tpu_custom_call.1} parent=1 // pred_fallthru
      _
    %84 = vsyncpa [#allocation3], 1

</llo_original>
